<compile_context>
chip_gen: v7x
topology: tpu7x:2x2x1
jax: 0.10.0
libtpu: 0.0.40
codegen_flags: <defaults>
</compile_context>

<pallas_src>
import functools
import math

import jax
import jax.numpy as jnp
from jax.experimental import pallas as pl
from jax.experimental.pallas import tpu as pltpu

MIB = 1024 * 1024


def _round_up(x, m):
    return ((x + m - 1) // m) * m


def _vmem_budget():
    """~75% of per-core VMEM (leaves headroom for compiler/spill scratch)."""
    try:
        cap = pltpu.get_tpu_info().vmem_capacity_bytes
    except Exception:
        cap = 64 * MIB  # conservative (v7x-sized) fallback
    return max(32 * MIB, int(0.75 * cap))


# ---------------------------------------------------------------------------
# Kernel 1: dense projection  y = x @ W + b   (W already in (in, out) layout)
# ---------------------------------------------------------------------------
def _dense_kernel(x_ref, w_ref, b_ref, o_ref):
    # x_ref: (tm, H) ; w_ref: (H, tn) ; b_ref: (1, tn) ; o_ref: (tm, tn)
    # Native-dtype operands into the MXU, f32 accumulate, bias add in f32.
    acc = jnp.dot(x_ref[...], w_ref[...], preferred_element_type=jnp.float32)
    acc = acc + b_ref[...].astype(jnp.float32)
    o_ref[...] = acc.astype(o_ref.dtype)


def _dense(x2d, w_io, b_row, *, row_tile=None):
    """x2d: (M, H); w_io: (H, N) (in, out) layout; b_row: (1, N)."""
    M, H = x2d.shape
    N = w_io.shape[1]
    itemsize = jnp.dtype(x2d.dtype).itemsize
    budget = _vmem_budget()

    if row_tile is None:
        # bigger row tiles on 128 MiB parts, smaller on 64 MiB (v7x) parts
        row_tile = 512 if budget >= 72 * MIB else 256

    tm = min(row_tile, _round_up(M, 8))
    Mp = _round_up(M, tm)
    # keep >=2 row tiles when possible (2-TC parts: avoid leaving a core idle)
    if Mp // tm < 2 and tm >= 16:
        tm = _round_up(tm // 2, 8)
        Mp = _round_up(M, tm)

    def need_bytes(tn):
        return (2 * tm * H * itemsize        # x tiles (double-buffered)
                + 2 * H * tn * itemsize      # weight (pipeline keeps 2 copies)
                + 2 * tn * itemsize          # bias
                + 2 * tm * tn * itemsize)    # output tiles

    # output-column tile: full N if it fits, else a 128-multiple divisor of N
    tn = N
    cand = N
    while need_bytes(tn) > budget:
        cand //= 2
        if cand < 128 or N % cand != 0 or cand % 128 != 0:
            break
        tn = cand

    if Mp != M:
        x2d = jnp.pad(x2d, ((0, Mp - M), (0, 0)))

    vmem_limit = int(min(max(need_bytes(tn) + 8 * MIB, 32 * MIB), budget))

    out = pl.pallas_call(
        _dense_kernel,
        out_shape=jax.ShapeDtypeStruct((Mp, N), x2d.dtype),
        grid_spec=pltpu.PrefetchScalarGridSpec(
            num_scalar_prefetch=0,
            grid=(Mp // tm, N // tn),
            in_specs=[
                pl.BlockSpec((tm, H), lambda i, j: (i, 0)),   # x rows
                pl.BlockSpec((H, tn), lambda i, j: (0, j)),   # weight columns
                pl.BlockSpec((1, tn), lambda i, j: (0, j)),   # bias columns
            ],
            out_specs=pl.BlockSpec((tm, tn), lambda i, j: (i, j)),
        ),
        compiler_params=pltpu.CompilerParams(
            dimension_semantics=("parallel", "parallel"),
            vmem_limit_bytes=vmem_limit,
        ),
    )(x2d, w_io, b_row)
    return out[:M]


# ---------------------------------------------------------------------------
# Kernel 2: per-(batch, query-tile) attention, ALL heads per step.
#   Heads are static column slices of the lane-dense (tq, H) / (Skv, H) blocks.
#   The 1/sqrt(Dh) scale is already folded into the query projection.
# ---------------------------------------------------------------------------
def _attention_kernel(*refs, num_heads, head_dim, has_mask, return_probs):
    q_ref, k_ref, v_ref = refs[0], refs[1], refs[2]
    nxt = 3
    mask_ref = None
    if has_mask:
        mask_ref = refs[nxt]
        nxt += 1
    ctx_ref = refs[nxt]
    nxt += 1
    probs_ref = refs[nxt] if return_probs else None

    q = q_ref[0]                                   # (tq, H)   all heads
    k = k_ref[0]                                   # (Skv, H)
    v = v_ref[0]                                   # (Skv, H)
    mask = mask_ref[0] if has_mask else None       # (1, Skv) or (tq, Skv), f32

    ctx_parts = []
    for h in range(num_heads):                     # static unroll over heads
        lo = h * head_dim
        q_h = q[:, lo:lo + head_dim]
        k_h = k[:, lo:lo + head_dim]
        v_h = v[:, lo:lo + head_dim]

        # scores[i, j] = sum_d q[i, d] * k[j, d]  (f32 accumulate on the MXU)
        scores = jax.lax.dot_general(
            q_h, k_h, dimension_numbers=(((1,), (1,)), ((), ())),
            preferred_element_type=jnp.float32)
        if has_mask:
            scores = scores + mask                 # broadcasts (1,Skv) or (tq,Skv)

        # numerically-stable softmax over the key axis, all in f32
        m = jnp.max(scores, axis=-1, keepdims=True)
        e = jnp.exp(scores - m)
        denom = jnp.sum(e, axis=-1, keepdims=True)
        probs = e * pl.reciprocal(denom, approx=False)   # exact for reference parity

        # TODO(synk): attention_probs dropout is identity at inference; training-mode
        # dropout (pltpu.prng_*) is not implemented here.

        ctx_parts.append(jnp.dot(probs.astype(v_h.dtype), v_h,
                                 preferred_element_type=jnp.float32))
        if return_probs:
            probs_ref[0, h] = probs.astype(probs_ref.dtype)

    # single lane-dense (tq, H) store of the merged-head context
    ctx_ref[0] = jnp.concatenate(ctx_parts, axis=-1).astype(ctx_ref.dtype)


def _attention(q3, k3, v3, mask3, *, num_heads, head_dim, return_probs):
    """q3: (B, Sq, H); k3, v3: (B, Skv, H); mask3: None, (B, 1, Skv) or (B, Sq, Skv) f32.
    Returns (ctx (B, Sq, H), probs (B, NH, Sq, Skv) or None)."""
    B, Sq, H = q3.shape
    Skv = k3.shape[1]
    dtype = q3.dtype
    itemsize = jnp.dtype(dtype).itemsize
    budget = _vmem_budget()

    mask_rows = 0 if mask3 is None else mask3.shape[1]

    def need(tq):
        nb = (2 * tq * H * itemsize              # q blocks (double-buffered)
              + 4 * Skv * H * itemsize           # k + v blocks
              + 2 * tq * H * itemsize            # ctx blocks
              + 3 * tq * Skv * 4)                # in-kernel f32 scores / exp
        if mask3 is not None:
            nb += 2 * (1 if mask_rows == 1 else tq) * Skv * 4
        if return_probs:
            nb += 2 * num_heads * tq * Skv * itemsize
        return nb

    # query tile: full Sq if it fits the budget (no padding), else a multiple of 8
    if need(Sq) <= budget:
        tq = Sq
    else:
        tq = 8
        for cand in (2048, 1024, 512, 256, 128, 64, 32, 16):
            if cand < Sq and need(cand) <= budget:
                tq = cand
                break
    Sqp = _round_up(Sq, tq)
    if Sqp != Sq:
        q3 = jnp.pad(q3, ((0, 0), (0, Sqp - Sq), (0, 0)))
        if mask3 is not None and mask_rows != 1:
            mask3 = jnp.pad(mask3, ((0, 0), (0, Sqp - Sq), (0, 0)))
    nq = Sqp // tq

    vmem_limit = int(min(max(need(tq) + 8 * MIB, 32 * MIB), budget))

    kernel = functools.partial(
        _attention_kernel, num_heads=num_heads, head_dim=head_dim,
        has_mask=mask3 is not None, return_probs=return_probs)

    in_specs = [
        pl.BlockSpec((1, tq, H), lambda b, qi: (b, qi, 0)),    # query rows (all heads)
        pl.BlockSpec((1, Skv, H), lambda b, qi: (b, 0, 0)),    # keys   (full Skv)
        pl.BlockSpec((1, Skv, H), lambda b, qi: (b, 0, 0)),    # values (full Skv)
    ]
    inputs = [q3, k3, v3]
    if mask3 is not None:
        if mask_rows == 1:
            in_specs.append(pl.BlockSpec((1, 1, Skv), lambda b, qi: (b, 0, 0)))
        else:
            in_specs.append(pl.BlockSpec((1, tq, Skv), lambda b, qi: (b, qi, 0)))
        inputs.append(mask3)

    ctx_shape = jax.ShapeDtypeStruct((B, Sqp, H), dtype)
    ctx_spec = pl.BlockSpec((1, tq, H), lambda b, qi: (b, qi, 0))
    if return_probs:
        out_shape = (ctx_shape, jax.ShapeDtypeStruct((B, num_heads, Sqp, Skv), dtype))
        out_specs = (ctx_spec,
                     pl.BlockSpec((1, num_heads, tq, Skv), lambda b, qi: (b, 0, qi, 0)))
    else:
        out_shape = ctx_shape
        out_specs = ctx_spec

    result = pl.pallas_call(
        kernel,
        out_shape=out_shape,
        grid_spec=pltpu.PrefetchScalarGridSpec(
            num_scalar_prefetch=0,
            grid=(B, nq),
            in_specs=in_specs,
            out_specs=out_specs,
        ),
        compiler_params=pltpu.CompilerParams(
            dimension_semantics=("parallel", "parallel"),
            vmem_limit_bytes=vmem_limit,
        ),
    )(*inputs)

    if return_probs:
        ctx, probs = result
        return ctx[:, :Sq], probs[:, :, :Sq]
    return result[:, :Sq], None


# ---------------------------------------------------------------------------
# Parameter preparation (done ONCE, outside the per-call path):
#   * PyTorch nn.Linear stores weight as (out, in); transpose to (in, out).
#   * Fuse Q/K/V into one matmul for the self-attention path.
#   * Fold the 1/sqrt(head_dim) attention scale into the query weight + bias so the
#     attention kernel never scales scores.
# ---------------------------------------------------------------------------
def prepare_bert_self_attention_params(q_w, q_b, k_w, k_b, v_w, v_b, num_heads):
    H = q_w.shape[1]
    D = H // num_heads
    scale = 1.0 / math.sqrt(D)
    q_w_s = q_w * scale
    q_b_s = q_b * scale
    return {
        "num_heads": num_heads,
        "w_qkv": jnp.concatenate([q_w_s.T, k_w.T, v_w.T], axis=1),        # (H, 3H)
        "b_qkv": jnp.concatenate([q_b_s, k_b, v_b]).reshape(1, 3 * H),
        "w_q": q_w_s.T,                                                   # (H, H)
        "b_q": q_b_s.reshape(1, H),
        "w_kv": jnp.concatenate([k_w.T, v_w.T], axis=1),                  # (H, 2H)
        "b_kv": jnp.concatenate([k_b, v_b]).reshape(1, 2 * H),
    }


# ---------------------------------------------------------------------------
# Full forward (matches BertSelfAttention.forward)
# ---------------------------------------------------------------------------
def bert_self_attention(hidden_states, attention_mask, params, *,
                        history_states=None, row_tile=None, return_probs=True):
    """hidden_states: (B, Sq, H). attention_mask: additive mask broadcastable to
    (B, 1, Sq, Skv) with a size-1 head dim (standard BERT extended mask), or None.
    Returns (context_layer (B, Sq, H), attention_probs (B, NH, Sq, Skv) or None)."""
    B, Sq, H = hidden_states.shape
    num_heads = params["num_heads"]
    D = H // num_heads

    kv_states = hidden_states if history_states is None else history_states
    Skv = kv_states.shape[1]

    xq = hidden_states.reshape(B * Sq, H)
    if history_states is None:
        qkv = _dense(xq, params["w_qkv"], params["b_qkv"], row_tile=row_tile)
        q2d, k2d, v2d = jnp.split(qkv, 3, axis=-1)
    else:
        q2d = _dense(xq, params["w_q"], params["b_q"], row_tile=row_tile)
        kv = _dense(kv_states.reshape(B * Skv, H), params["w_kv"], params["b_kv"],
                    row_tile=row_tile)
        k2d, v2d = jnp.split(kv, 2, axis=-1)

    # NO head transpose here: heads are sliced inside the attention kernel.
    q3 = q2d.reshape(B, Sq, H)
    k3 = k2d.reshape(B, Skv, H)
    v3 = v2d.reshape(B, Skv, H)

    if attention_mask is None:
        mask3 = None
    else:
        m = jnp.asarray(attention_mask, jnp.float32)
        if m.ndim == 4:
            if m.shape[1] != 1:
                # TODO(synk): per-head attention masks are not supported by this kernel.
                raise NotImplementedError("per-head attention masks are not supported")
            m = m[:, 0]
        while m.ndim < 3:
            m = m[None]
        if m.shape[-2] == 1:
            mask3 = jnp.broadcast_to(m, (B, 1, Skv))      # key-only mask, tiny DMA
        else:
            mask3 = jnp.broadcast_to(m, (B, Sq, Skv))     # per-query mask

    ctx, probs = _attention(q3, k3, v3, mask3, num_heads=num_heads, head_dim=D,
                            return_probs=return_probs)
    return ctx, probs


# ---------------------------------------------------------------------------
# Pure-JAX reference
# ---------------------------------------------------------------------------
def _reference(hidden_states, attention_mask, q_w, q_b, k_w, k_b, v_w, v_b, num_heads,
               history_states=None):
    B, Sq, H = hidden_states.shape
    D = H // num_heads
    kv = hidden_states if history_states is None else history_states
    Skv = kv.shape[1]
    q = hidden_states @ q_w.T + q_b
    k = kv @ k_w.T + k_b
    v = kv @ v_w.T + v_b

    def split(x, S):
        return x.reshape(B, S, num_heads, D).transpose(0, 2, 1, 3)

    q, k, v = split(q, Sq), split(k, Skv), split(v, Skv)
    scores = jnp.einsum("bhqd,bhkd->bhqk", q, k) / math.sqrt(D)
    if attention_mask is not None:
        scores = scores + attention_mask
    probs = jax.nn.softmax(scores, axis=-1)
    ctx = jnp.einsum("bhqk,bhkd->bhqd", probs, v)
    ctx = ctx.transpose(0, 2, 1, 3).reshape(B, Sq, H)
    return ctx, probs


if __name__ == "__main__":
    B, S, H, NH = 2, 8, 32, 4

    key = jax.random.PRNGKey(0)
    ks = jax.random.split(key, 8)

    hidden_states = jax.random.normal(ks[0], (B, S, H), dtype=jnp.float32)

    wscale = 1.0 / math.sqrt(H)
    q_w = jax.random.normal(ks[1], (H, H), dtype=jnp.float32) * wscale
    q_b = jax.random.normal(ks[2], (H,), dtype=jnp.float32) * 0.02
    k_w = jax.random.normal(ks[3], (H, H), dtype=jnp.float32) * wscale
    k_b = jax.random.normal(ks[4], (H,), dtype=jnp.float32) * 0.02
    v_w = jax.random.normal(ks[5], (H, H), dtype=jnp.float32) * wscale
    v_b = jax.random.normal(ks[6], (H,), dtype=jnp.float32) * 0.02

    # standard BERT additive extended mask (B, 1, 1, S): last 2 keys of batch 1 masked
    key_keep = jnp.ones((B, S), dtype=jnp.float32).at[1, -2:].set(0.0)
    attention_mask = (1.0 - key_keep)[:, None, None, :] * -10000.0

    params = prepare_bert_self_attention_params(q_w, q_b, k_w, k_b, v_w, v_b, NH)

    # 1) full forward (context + probs), masked
    context, probs = bert_self_attention(hidden_states, attention_mask, params)
    context = jax.block_until_ready(context)
    probs = jax.block_until_ready(probs)
    ref_ctx, ref_probs = _reference(hidden_states, attention_mask,
                                    q_w, q_b, k_w, k_b, v_w, v_b, NH)
    assert context.shape == (B, S, H)
    assert probs.shape == (B, NH, S, S)
    assert jnp.allclose(context, ref_ctx, atol=1e-5, rtol=1e-5), "context mismatch"
    assert jnp.allclose(probs, ref_probs, atol=1e-5, rtol=1e-5), "probs mismatch"

    # 2) fast path: attention_probs not materialized
    ctx_fast, probs_none = bert_self_attention(hidden_states, attention_mask, params,
                                               return_probs=False)
    ctx_fast = jax.block_until_ready(ctx_fast)
    assert probs_none is None
    assert jnp.allclose(ctx_fast, ref_ctx, atol=1e-5, rtol=1e-5), "fast-path mismatch"

    # 3) no-mask kernel variant
    ctx_nm, _ = bert_self_attention(hidden_states, None, params, return_probs=False)
    ctx_nm = jax.block_until_ready(ctx_nm)
    ref_nm, _ = _reference(hidden_states, None, q_w, q_b, k_w, k_b, v_w, v_b, NH)
    assert jnp.allclose(ctx_nm, ref_nm, atol=1e-5, rtol=1e-5), "no-mask mismatch"

    # 4) history_states path (K/V from a longer history sequence)
    history = jax.random.normal(ks[7], (B, 2 * S, H), dtype=jnp.float32)
    ctx_h, probs_h = bert_self_attention(hidden_states, None, params,
                                         history_states=history)
    ctx_h = jax.block_until_ready(ctx_h)
    probs_h = jax.block_until_ready(probs_h)
    ref_ctx_h, ref_probs_h = _reference(hidden_states, None, q_w, q_b, k_w, k_b,
                                        v_w, v_b, NH, history_states=history)
    assert ctx_h.shape == (B, S, H) and probs_h.shape == (B, NH, S, 2 * S)
    assert jnp.allclose(ctx_h, ref_ctx_h, atol=1e-5, rtol=1e-5), "history ctx mismatch"
    assert jnp.allclose(probs_h, ref_probs_h, atol=1e-5, rtol=1e-5), "history probs mismatch"

    print("KERNEL_OK")
</pallas_src>

<mosaic_0001>
module attributes {stable_mosaic.version = 11 : i64} {
  func.func @_dense_kernel(%arg0: i32, %arg1: i32, %arg2: memref<8x32xf32, #tpu.memory_space<vmem>>, %arg3: memref<32x96xf32, #tpu.memory_space<vmem>>, %arg4: memref<1x96xf32, #tpu.memory_space<vmem>>, %arg5: memref<8x96xf32, #tpu.memory_space<vmem>>) attributes {dimension_semantics = [#tpu.dimension_semantics<parallel>, #tpu.dimension_semantics<parallel>], iteration_bounds = array<i64: 2, 1>, scalar_prefetch = 0 : i64, scratch_operands = 0 : i64, tpu.core_type = #tpu.core_type<tc>, window_params = [{transform_indices = @transform_0, window_bounds = array<i64: 8, 32>}, {transform_indices = @transform_1, window_bounds = array<i64: 32, 96>}, {transform_indices = @transform_2, window_bounds = array<i64: 1, 96>}, {transform_indices = @transform_3, window_bounds = array<i64: 8, 96>}]} {
    %c0 = arith.constant 0 : index
    %c0_0 = arith.constant 0 : index
    %0 = vector.load %arg2[%c0, %c0_0] : memref<8x32xf32, #tpu.memory_space<vmem>>, vector<8x32xf32>
    %c0_1 = arith.constant 0 : index
    %c0_2 = arith.constant 0 : index
    %1 = vector.load %arg3[%c0_1, %c0_2] : memref<32x96xf32, #tpu.memory_space<vmem>>, vector<32x96xf32>
    %cst = arith.constant dense<0.000000e+00> : vector<8x96xf32>
    %2 = tpu.matmul %0, %1, %cst {dimension_numbers = #tpu.dot_dimension_numbers<[1], [0], [0], [1], [0, 0, 1, 1], [], []>} : vector<8x32xf32>, vector<32x96xf32>, vector<8x96xf32> -> vector<8x96xf32>
    %c0_3 = arith.constant 0 : index
    %c0_4 = arith.constant 0 : index
    %3 = vector.load %arg4[%c0_3, %c0_4] : memref<1x96xf32, #tpu.memory_space<vmem>>, vector<1x96xf32>
    %4 = vector.broadcast %3 : vector<1x96xf32> to vector<8x96xf32>
    %5 = arith.addf %2, %4 : vector<8x96xf32>
    %c0_5 = arith.constant 0 : index
    %c0_6 = arith.constant 0 : index
    %6 = vector.load %arg5[%c0_5, %c0_6] : memref<8x96xf32, #tpu.memory_space<vmem>>, vector<8x96xf32>
    tpu.vector_store %arg5[%c0_5, %c0_6], %5 {strides = array<i32>} : memref<8x96xf32, #tpu.memory_space<vmem>>, vector<8x96xf32>,
    return
  }
  func.func @transform_0(%arg0: i32, %arg1: i32) -> (i32, i32) {
    %c0_i32 = arith.constant 0 : i32
    %c0_i32_0 = arith.constant 0 : i32
    return %arg0, %c0_i32 : i32, i32
  }
  func.func @transform_1(%arg0: i32, %arg1: i32) -> (i32, i32) {
    %c0_i32 = arith.constant 0 : i32
    %c0_i32_0 = arith.constant 0 : i32
    return %c0_i32, %arg1 : i32, i32
  }
  func.func @transform_2(%arg0: i32, %arg1: i32) -> (i32, i32) {
    %c0_i32 = arith.constant 0 : i32
    %c0_i32_0 = arith.constant 0 : i32
    return %c0_i32, %arg1 : i32, i32
  }
  func.func @transform_3(%arg0: i32, %arg1: i32) -> (i32, i32) {
    %c0_i32 = arith.constant 0 : i32
    return %arg0, %arg1 : i32, i32
  }
}

</mosaic_0001>

<llo_original>
// kernel: tpu_custom_call.1
$region0: #{tpu_custom_call.1}
  #allocation0 [shape = 'u32[]', space=smem, size = 0x4, offset = 0x4, fixed_abs, tag = 'smem constant byte address 0x4 - core index']
  #allocation1 [shape = 'u32[144,128]{1,0:T(1,128)}', space=vmem, size = 0x12000, scoped, tag = 'internal scratch']
  %s0 = inlined_call_operand.hbm [shape: f32[16,32], index: 0, kind: input, shape index: {}]
  %s1 = inlined_call_operand.hbm [shape: f32[32,96], index: 1, kind: input, shape index: {}]
  %s2 = inlined_call_operand.vmem [shape: f32[1,96], index: 2, kind: input, shape index: {}]
  %s3 = inlined_call_operand.hbm [shape: f32[16,96], index: 3, kind: output, shape index: {}]
  %s4 = sld [smem:[#allocation0]]
  $region53: #{tpu_custom_call.1} parent=0
    _
  %s6 = ssub.s32 1, %s4
  %s7 = scalar_select 0, %s6, %s4
  $region1: #{tpu_custom_call.1} parent=0
    #allocation2 [shape = 'u8[8192]{0}', space=vmem, size = 0x2000, scoped, tag = 'input window, operand 0']
    #allocation3 [shape = 's32[2]{0}', space=sflag, size = 0x8, scoped, tag = 'scoped memory for tpu_custom_call.1']
    #allocation4 [shape = 's32[2]{0}', space=sflag, size = 0x8, scoped, tag = 'scoped memory for tpu_custom_call.1']
    #allocation5 [shape = 'u8[16384]{0}', space=vmem, size = 0x4000, scoped, tag = 'input window, operand 1, single buffered']
    #allocation6 [shape = 's32[1]{0}', space=sflag, size = 0x4, scoped, tag = 'scoped memory for tpu_custom_call.1']
    #allocation7 [shape = 'u8[8192]{0}', space=vmem, size = 0x2000, scoped, tag = 'output window, operand 0']
    %8 = vsyncpa [#allocation3], 0
    %s9 = scalar_lea.sflag [#allocation3], 1
    %10 = vsyncpa %s9, 0
    %11 = vsyncpa [#allocation6], 0
    %12 = vsyncpa [#allocation4], 0
    %s13 = scalar_lea.sflag [#allocation4], 1
    %14 = vsyncpa %s13, 0
    loop: start=0, step=1, limit=4
    $region2: #{tpu_custom_call.1} parent=1 // loop_pre_header
      _
    $region3: #{tpu_custom_call.1} parent=1 // loop_header
      %s16 = sphi 0, %s20
      %p17 = scmp.ge.s32.totalorder %s16, 4
      %s23 = sphi 0, %s35
      %s24 = sphi 0, %s31
      %s25 = sphi 0, %s23
      %s26 = sphi 0, %s24
      %s27 = sphi 0, %s25
      %s28 = sphi 0, %s26
      %s38 = sphi 0, %s40
      %s41 = sphi 0, %s38
      %s42 = sphi 0, %s41
      %s58 = sphi 0, %s42
      %s64 = sphi 0, %s66
      %s67 = sphi 0, %s64
      %s68 = sphi 0, %s67
      %s84 = sphi 0, %s68
      %s90 = sphi 0, %s92
      %s93 = sphi 0, %s90
      %s94 = sphi 0, %s93
      %s110 = sphi 0, %s94
      %s118 = sphi 0, %s120
      %s121 = sphi 0, %s118
      %s122 = sphi 0, %s121
      %s138 = sphi 0, %s122
    $region4: #{tpu_custom_call.1} parent=1 // loop_header_branch
      %19 = sbr.rel (%p17) target = $region8
    $region5: #{tpu_custom_call.1} parent=1 // loop_body
      %s21 = ssub.s32 %s16, 1
      %s22 = ssub.s32 %s16, 2
      %s29 = sadd.s32 1, %s24
      %p30 = scmp.ge.s32.totalorder %s29, 1
      %s31 = scalar_select %p30, 0, %s29
      %s32 = sadd.s32 1, %s23
      %s33 = scalar_select %p30, %s32, %s23
      %p34 = scmp.ge.s32.totalorder %s33, 2
      %s35 = scalar_select %p34, 0, %s33
      %s36 = ssub.s32 %s23, %s35
      %p37 = scmp.eq.s32.totalorder %s36, 0
      %s39 = sadd.s32 %s38, 1
      %s40 = scalar_select %p37, %s38, %s39
      %p43 = pneg %p37
      %p44 = scmp.eq.s32.totalorder %s16, 1
      %p45 = por %p43, %p44
      %p46 = scmp.ne.s32.totalorder %s38, %s41
      %p47 = scmp.eq.s32.totalorder %s16, 0
      %p48 = por %p46, %p47
      %p49 = scmp.ne.s32.totalorder %s38, %s41
      %p50 = scmp.eq.s32.totalorder %s21, 1
      %p51 = por %p49, %p50
      %p52 = scmp.ne.s32.totalorder %s41, %s42
      %p53 = scmp.eq.s32.totalorder %s21, 0
      %p54 = por %p52, %p53
      %p55 = scmp.ne.s32.totalorder %s41, %s42
      %p56 = scmp.eq.s32.totalorder %s22, 1
      %p57 = por %p55, %p56
      %p59 = scmp.ne.s32.totalorder %s42, %s58
      %p60 = scmp.eq.s32.totalorder %s22, 0
      %p61 = por %p59, %p60
      %s62 = ssub.s32 %s24, %s31
      %p63 = scmp.eq.s32.totalorder %s62, 0
      %s65 = sadd.s32 %s64, 1
      %s66 = scalar_select %p63, %s64, %s65
      %p69 = pneg %p63
      %p70 = scmp.eq.s32.totalorder %s16, 1
      %p71 = por %p69, %p70
      %p72 = scmp.ne.s32.totalorder %s64, %s67
      %p73 = scmp.eq.s32.totalorder %s16, 0
      %p74 = por %p72, %p73
      %p75 = scmp.ne.s32.totalorder %s64, %s67
      %p76 = scmp.eq.s32.totalorder %s21, 1
      %p77 = por %p75, %p76
      %p78 = scmp.ne.s32.totalorder %s67, %s68
      %p79 = scmp.eq.s32.totalorder %s21, 0
      %p80 = por %p78, %p79
      %p81 = scmp.ne.s32.totalorder %s67, %s68
      %p82 = scmp.eq.s32.totalorder %s22, 1
      %p83 = por %p81, %p82
      %p85 = scmp.ne.s32.totalorder %s68, %s84
      %p86 = scmp.eq.s32.totalorder %s22, 0
      %p87 = por %p85, %p86
      %s88 = ssub.s32 %s24, %s31
      %p89 = scmp.eq.s32.totalorder %s88, 0
      %s91 = sadd.s32 %s90, 1
      %s92 = scalar_select %p89, %s90, %s91
      %p95 = pneg %p89
      %p96 = scmp.eq.s32.totalorder %s16, 1
      %p97 = por %p95, %p96
      %p98 = scmp.ne.s32.totalorder %s90, %s93
      %p99 = scmp.eq.s32.totalorder %s16, 0
      %p100 = por %p98, %p99
      %p101 = scmp.ne.s32.totalorder %s90, %s93
      %p102 = scmp.eq.s32.totalorder %s21, 1
      %p103 = por %p101, %p102
      %p104 = scmp.ne.s32.totalorder %s93, %s94
      %p105 = scmp.eq.s32.totalorder %s21, 0
      %p106 = por %p104, %p105
      %p107 = scmp.ne.s32.totalorder %s93, %s94
      %p108 = scmp.eq.s32.totalorder %s22, 1
      %p109 = por %p107, %p108
      %p111 = scmp.ne.s32.totalorder %s94, %s110
      %p112 = scmp.eq.s32.totalorder %s22, 0
      %p113 = por %p111, %p112
      %s114 = ssub.s32 %s23, %s35
      %s115 = ssub.s32 %s24, %s31
      %s116 = sor.u32 %s114, %s115
      %p117 = scmp.eq.s32.totalorder %s116, 0
      %s119 = sadd.s32 %s118, 1
      %s120 = scalar_select %p117, %s118, %s119
      %p123 = pneg %p117
      %p124 = scmp.eq.s32.totalorder %s16, 1
      %p125 = por %p123, %p124
      %p126 = scmp.ne.s32.totalorder %s118, %s121
      %p127 = scmp.eq.s32.totalorder %s16, 0
      %p128 = por %p126, %p127
      %p129 = scmp.ne.s32.totalorder %s118, %s121
      %p130 = scmp.eq.s32.totalorder %s21, 1
      %p131 = por %p129, %p130
      %p132 = scmp.ne.s32.totalorder %s121, %s122
      %p133 = scmp.eq.s32.totalorder %s21, 0
      %p134 = por %p132, %p133
      %p135 = scmp.ne.s32.totalorder %s121, %s122
      %p136 = scmp.eq.s32.totalorder %s22, 1
      %p137 = por %p135, %p136
      %p139 = scmp.ne.s32.totalorder %s122, %s138
      %p140 = scmp.eq.s32.totalorder %s22, 0
      %p141 = por %p139, %p140
      %p142 = scmp.le.s32.totalorder 1, %s16
      %p143 = scmp.lt.s32.totalorder %s16, 3
      %p144 = pnand %p142, %p143
      %p145 = pneg %p144
      // Predicated region
      $region9: #{tpu_custom_call.1} parent=5 // pred_check
        _
      $region10: #{tpu_custom_call.1} parent=5 // pred_check_branch
        %147 = sbr.rel (%p144) target = $region12
      $region11: #{tpu_custom_call.1} parent=5 // pred_region
        %s148 = ssub.s32 %s16, 1
        // Predicated region
        $region13: #{tpu_custom_call.1} parent=11 // pred_check
          %p149 = pneg %p80
        $region14: #{tpu_custom_call.1} parent=11 // pred_check_branch
          %151 = sbr.rel (%p149) target = $region16
        $region15: #{tpu_custom_call.1} parent=11 // pred_region
          %s153 = ssub.s32 512, 512
          %154 = vsyncadd [#allocation6], %s153
          %s155 = smul.addr %s26, 128
          %s156 = scalar_lea.hbm %s1, %s155
          %s157 = sshll.u32 [#allocation5], 4
          %s158 = int_to_ptr.vmem [resolvable:$true] %s157
          %163 = dma.hbm_to_vmem [thread:$0]  %s156, 512, %s158, [#allocation6], 128, 128, 8
        $region16: #{tpu_custom_call.1} parent=11 // pred_fallthru
          _
        // Predicated region
        $region17: #{tpu_custom_call.1} parent=11 // pred_check
          %p164 = pneg %p106
        $region18: #{tpu_custom_call.1} parent=11 // pred_check_branch
          %166 = sbr.rel (%p164) target = $region20
        $region19: #{tpu_custom_call.1} parent=11 // pred_region
          %p167 = scmp.lt.s32.totalorder %s26, 0
          %s168 = scalar_select %p167, %s26, 0
          %s169 = scalar_lea.vmem %s2, %s168
        $region20: #{tpu_custom_call.1} parent=11 // pred_fallthru
          _
      $region12: #{tpu_custom_call.1} parent=5 // pred_fallthru
        _
      %p170 = scmp.lt.s32.totalorder %s16, 2
      // Predicated region
      $region21: #{tpu_custom_call.1} parent=5 // pred_check
        %p171 = pneg %p170
      $region22: #{tpu_custom_call.1} parent=5 // pred_check_branch
        %173 = sbr.rel (%p171) target = $region24
      $region23: #{tpu_custom_call.1} parent=5 // pred_region
        // Predicated region
        $region25: #{tpu_custom_call.1} parent=23 // pred_check
          %p174 = pneg %p48
        $region26: #{tpu_custom_call.1} parent=23 // pred_check_branch
          %176 = sbr.rel (%p174) target = $region28
        $region27: #{tpu_custom_call.1} parent=23 // pred_region
          %s177 = sand.u32 %s38, 1
          %s178 = scalar_lea.sflag [#allocation3], %s177
          %s179 = sand.u32 %s38, 1
          %s180 = smul.addr %s179, 8
          %s181 = scalar_lea.vmem [#allocation2], %s180
          %s183 = ssub.s32 128, 128
          %184 = vsyncadd %s178, %s183
          %s185 = smul.addr %s23, 128
          %s186 = scalar_lea.hbm %s0, %s185
          %s188 = sshll.u32 %s181, 4
          %s189 = int_to_ptr.vmem [resolvable:$true] %s188
          %191 = dma.hbm_to_vmem [thread:$0]  %s186, 128, %s189, %s178
        $region28: #{tpu_custom_call.1} parent=23 // pred_fallthru
          _
      $region24: #{tpu_custom_call.1} parent=5 // pred_fallthru
        _
      %p192 = scmp.le.s32.totalorder 1, %s16
      %p193 = scmp.lt.s32.totalorder %s16, 3
      %p194 = pnand %p192, %p193
      %p195 = pneg %p194
      // Predicated region
      $region29: #{tpu_custom_call.1} parent=5 // pred_check
        _
      $region30: #{tpu_custom_call.1} parent=5 // pred_check_branch
        %197 = sbr.rel (%p194) target = $region32
      $region31: #{tpu_custom_call.1} parent=5 // pred_region
        %s198 = ssub.s32 %s16, 1
        %s199 = sand.u32 %s41, 1
        %s200 = scalar_lea.sflag [#allocation3], %s199
        %s201 = sand.u32 %s41, 1
        %s202 = smul.addr %s201, 8
        %s203 = scalar_lea.vmem [#allocation2], %s202
        // Predicated region
        $region33: #{tpu_custom_call.1} parent=31 // pred_check
          %p204 = pneg %p54
        $region34: #{tpu_custom_call.1} parent=31 // pred_check_branch
          %206 = sbr.rel (%p204) target = $region36
        $region35: #{tpu_custom_call.1} parent=31 // pred_region
          %207 = dma.done %s200, 128
        $region36: #{tpu_custom_call.1} parent=31 // pred_fallthru
          _
        // Predicated region
        $region37: #{tpu_custom_call.1} parent=31 // pred_check
          %p208 = pneg %p80
        $region38: #{tpu_custom_call.1} parent=31 // pred_check_branch
          %210 = sbr.rel (%p208) target = $region40
        $region39: #{tpu_custom_call.1} parent=31 // pred_region
          %211 = dma.done [#allocation6], 512
        $region40: #{tpu_custom_call.1} parent=31 // pred_fallthru
          _
        %s212 = sand.u32 %s41, 1
        %s213 = scalar_lea.sflag [#allocation3], %s212
        %s214 = sand.u32 %s41, 1
        %s215 = smul.addr %s214, 8
        %s216 = scalar_lea.vmem [#allocation2], %s215
        %p217 = pneg %p54
        %p218 = pneg %p51
        %p219 = pneg %p80
        %p220 = pneg %p77
        %p221 = scmp.lt.s32.totalorder %s26, 0
        %s222 = scalar_select %p221, %s26, 0
        %s223 = scalar_lea.vmem %s2, %s222
        %p224 = pneg %p106
        %p225 = pneg %p103
        %p226 = pneg %p134
        %p227 = pneg %p131
        %s228 = sand.u32 %s121, 1
        %s229 = scalar_lea.sflag [#allocation4], %s228
        %s230 = sand.u32 %s121, 1
        %s231 = smul.addr %s230, 8
        %s232 = scalar_lea.vmem [#allocation7], %s231
        %p233 = scmp.lt.s32.totalorder %s26, 0
        %s234 = scalar_select %p233, %s26, 0
        %s235 = scalar_lea.vmem %s2, %s234
        %v236 = vld [vmem:[%s203] sm:$0xff]
        %v237 = vld [vmem:[#allocation5] sm:$0xff]
        %v238 = vld [vmem:[#allocation5 + $0x8] sm:$0xff]
        %v239 = vld [vmem:[#allocation5 + $0x10] sm:$0xff]
        %v240 = vld [vmem:[#allocation5 + $0x18] sm:$0xff]
        %v241 = vld [vmem:[%s235] sm:$0x1]
        %v243 = vlaneseq
        %v244 = vshrl.u32 %v243, 7
        %v245 = vsub.s32 0, %v244
        %v246 = vrot.slane %v241, %v245
        %vm248 = vcmask 261120
        %v250 = vsel %vm248, %v236, 0
        %252 = vmatprep.subr.mxu0 0.0
        %253 = vmatpush1.msra.mxu0 %v237
        %254 = vmatprep.subr.mxu0 0.0
        %255 = vmatpush1.msra.mxu0 %v238
        %256 = vmatprep.subr.mxu0 0.0
        %257 = vmatpush1.msra.mxu0 %v239
        %258 = vmatprep.subr.mxu0 0.0
        %259 = vmatpush1.msra.mxu0 %v240
        %260 = vmatprep.subr.mxu0 0.0
        %261 = vmatpush1.msra.mxu0 0.0
        %262 = vmatprep.subr.mxu0 0.0
        %263 = vmatpush1.msra.mxu0 0.0
        %264 = vmatprep.subr.mxu0 0.0
        %265 = vmatpush1.msra.mxu0 0.0
        %266 = vmatprep.subr.mxu0 0.0
        %267 = vmatpush1.msra.mxu0 0.0
        %268 = vmatprep.subr.mxu0 0.0
        %269 = vmatpush1.msra.mxu0 0.0
        %270 = vmatprep.subr.mxu0 0.0
        %271 = vmatpush1.msra.mxu0 0.0
        %272 = vmatprep.subr.mxu0 0.0
        %273 = vmatpush1.msra.mxu0 0.0
        %274 = vmatprep.subr.mxu0 0.0
        %275 = vmatpush1.msra.mxu0 0.0
        %276 = vmatprep.subr.mxu0 0.0
        %277 = vmatpush1.msra.mxu0 0.0
        %278 = vmatprep.subr.mxu0 0.0
        %279 = vmatpush1.msra.mxu0 0.0
        %280 = vmatprep.subr.mxu0 0.0
        %281 = vmatpush1.msra.mxu0 0.0
        %282 = vmatprep.subr.mxu0 0.0
        %283 = vmatpush1.msra.mxu0 0.0
        %284 = vmatprep.subr.mxu0 0.0
        %285 = vmatpush1.msra.mxu0 0.0
        %286 = vmatprep.subr.mxu0 0.0
        %287 = vmatpush1.msra.mxu0 0.0
        %288 = vmatprep.subr.mxu0 0.0
        %289 = vmatpush1.msra.mxu0 0.0
        %290 = vmatprep.subr.mxu0 0.0
        %291 = vmatpush1.msra.mxu0 0.0
        %292 = vmatprep.subr.mxu0 0.0
        %293 = vmatpush1.msra.mxu0 0.0
        %294 = vmatprep.subr.mxu0 0.0
        %295 = vmatpush1.msra.mxu0 0.0
        %296 = vmatprep.subr.mxu0 0.0
        %297 = vmatpush1.msra.mxu0 0.0
        %298 = vmatprep.subr.mxu0 0.0
        %299 = vmatpush1.msra.mxu0 0.0
        %300 = vmatprep.subr.mxu0 0.0
        %301 = vmatpush1.msra.mxu0 0.0
        %302 = vmatprep.subr.mxu0 0.0
        %303 = vmatpush1.msra.mxu0 0.0
        %304 = vmatprep.subr.mxu0 0.0
        %305 = vmatpush1.msra.mxu0 0.0
        %306 = vmatprep.subr.mxu0 0.0
        %307 = vmatpush1.msra.mxu0 0.0
        %308 = vmatprep.subr.mxu0 0.0
        %309 = vmatpush1.msra.mxu0 0.0
        %310 = vmatprep.subr.mxu0 0.0
        %311 = vmatpush1.msra.mxu0 0.0
        %312 = vmatprep.subr.mxu0 0.0
        %313 = vmatpush1.msra.mxu0 0.0
        %314 = vmatprep.subr.mxu0 0.0
        %315 = vmatpush1.msra.mxu0 0.0
        %316 = vmatprep.mubr.f32.mxu0 0.0
        %317 = vmatmul.mubr.f32.gmra.mrb[0].mxu0 %v250
        %v318 = vpop.f32.mrb[0].mxu0
        %v319 = vadd.f32 %v246, %v318
        %v320 = vpop.f32.mrb[0].mxu0
        %321 = vdwg.mxu0
        %vm322 = vcmask 785408
        %323 = vst.msk [vmem:[%s232] sm:$0xff] %vm322, %v319
        %s324 = sand.u32 %s121, 1
        %s325 = scalar_lea.sflag [#allocation4], %s324
        %s326 = sand.u32 %s121, 1
        %s327 = smul.addr %s326, 8
        %s328 = scalar_lea.vmem [#allocation7], %s327
        // Predicated region
        $region41: #{tpu_custom_call.1} parent=31 // pred_check
          %p329 = pneg %p131
        $region42: #{tpu_custom_call.1} parent=31 // pred_check_branch
          %331 = sbr.rel (%p329) target = $region44
        $region43: #{tpu_custom_call.1} parent=31 // pred_region
          %s333 = ssub.s32 128, 128
          %334 = vsyncadd %s325, %s333
          %s335 = sadd.s32 %s26, %s25
          %s336 = smul.addr %s335, 128
          %s337 = scalar_lea.hbm %s3, %s336
          %s339 = sshll.u32 %s328, 4
          %s340 = int_to_ptr.vmem [resolvable:$true] %s339
          %342 = dma.vmem_to_hbm [thread:$0]  %s340, 128, %s337, %s325
        $region44: #{tpu_custom_call.1} parent=31 // pred_fallthru
          _
      $region32: #{tpu_custom_call.1} parent=5 // pred_fallthru
        _
      %p343 = scmp.le.s32.totalorder 2, %s16
      // Predicated region
      $region45: #{tpu_custom_call.1} parent=5 // pred_check
        %p344 = pneg %p343
      $region46: #{tpu_custom_call.1} parent=5 // pred_check_branch
        %346 = sbr.rel (%p344) target = $region48
      $region47: #{tpu_custom_call.1} parent=5 // pred_region
        %s347 = ssub.s32 %s16, 2
        // Predicated region
        $region49: #{tpu_custom_call.1} parent=47 // pred_check
          %p348 = pneg %p137
        $region50: #{tpu_custom_call.1} parent=47 // pred_check_branch
          %350 = sbr.rel (%p348) target = $region52
        $region51: #{tpu_custom_call.1} parent=47 // pred_region
          %s351 = sand.u32 %s122, 1
          %s352 = scalar_lea.sflag [#allocation4], %s351
          %s353 = sand.u32 %s122, 1
          %s354 = smul.addr %s353, 8
          %s355 = scalar_lea.vmem [#allocation7], %s354
          %356 = dma.done %s352, 128
        $region52: #{tpu_custom_call.1} parent=47 // pred_fallthru
          _
      $region48: #{tpu_custom_call.1} parent=5 // pred_fallthru
        _
    $region6: #{tpu_custom_call.1} parent=1 // loop_footer
      %s20 = sadd.s32 1, %s16
    $region7: #{tpu_custom_call.1} parent=1 // loop_footer_branch
      %15 = sbr.rel target = $region3
    $region8: #{tpu_custom_call.1} parent=1 // loop_exit
      _
    %357 = vsyncpa [#allocation3], 1
    %s358 = scalar_lea.sflag [#allocation3], 1
    %359 = vsyncpa %s358, 1
    %360 = vsyncpa [#allocation6], 1
    %361 = vsyncpa [#allocation4], 1
    %s362 = scalar_lea.sflag [#allocation4], 1
    %363 = vsyncpa %s362, 1

</llo_original>
